<compile_context>
chip_gen: v5e
topology: v5e:2x2
jax: 0.10.0
libtpu: 0.0.40
codegen_flags: <defaults>
</compile_context>

<pallas_src>
import functools

import jax
import jax.numpy as jnp
from jax.experimental import pallas as pl
from jax.experimental.pallas import tpu as pltpu


_LANE = 128
_MAX_ROW_TILE = 512
_MAX_LANE_TILE = 512
_TARGET_STEP_BYTES = 4 * 1024 * 1024    # ~2-4 MB blocks reach >=85% of HBM roofline
_VMEM_BUDGET = 12 * 1024 * 1024         # double-buffered cap; fits v5e's 16 MiB default
_PALLAS_MIN_ELEMS = 1024                # below this, call overhead dwarfs the work


def _cdiv(a, b):
    return -(-a // b)


def _round_up(x, m):
    return _cdiv(x, m) * m


def _tight_tile(extent, max_tile, quantum):
    """Largest tile <= max_tile (a multiple of `quantum`) such that
    round_up(extent, tile) tracks `extent` tightly (minimal padding waste)."""
    extent_q = _round_up(max(extent, 1), quantum)
    n_tiles = _cdiv(extent_q, max_tile)
    return _round_up(_cdiv(extent_q, n_tiles), quantum)


def _maxpool_kernel(x_ref, o_ref, *, k):
    # x_ref: (k, ROW_TILE, LANE_TILE) tap-major slabs (tap t = element t of each
    #        non-overlapping window); each x_ref[t] is a lane-dense 2-D slab.
    # o_ref: (ROW_TILE, LANE_TILE)
    acc = x_ref[0]
    for t in range(1, k):               # k-1 pure-VPU elementwise maximums
        acc = jnp.maximum(acc, x_ref[t])
    o_ref[...] = acc


def _maxpool1d_pad_same_ref(x, kernel_size):
    """Pure-JAX reference mirroring the PyTorch forward (also the tiny-shape path)."""
    k = int(kernel_size)
    stride = 1
    l = x.shape[-1]
    out_dim = (l + stride - 1) // stride
    p = max(0, (out_dim - 1) * stride + k - l)
    pad_left = p // 2
    pad_right = p - pad_left
    xp = jnp.pad(x, ((0, 0), (0, 0), (pad_left, pad_right)))
    l_out = (l + p - k) // k + 1
    xp = xp[..., : l_out * k]
    return jnp.max(xp.reshape(*xp.shape[:-1], l_out, k), axis=-1)


@functools.partial(jax.jit, static_argnames=("kernel_size",))
def my_maxpool1d_pad_same(x, kernel_size):
    """x: (N, C, L) -> (N, C, ceil(L / kernel_size)), matching MyMaxPool1dPadSame."""
    k = int(kernel_size)
    n, c, l = x.shape
    rows = n * c
    stride = 1  # only used for the padding arithmetic, exactly as in the module

    # --- torch-module padding / output-length arithmetic ----------------------
    out_dim = (l + stride - 1) // stride
    p = max(0, (out_dim - 1) * stride + k - l)
    pad_left = p // 2
    l_out = (l + p - k) // k + 1

    # Tiny deep-layer feature maps: wrapper copies + fixed pallas_call cost
    # dwarf the work -> plain XLA path.
    if rows * l_out < _PALLAS_MIN_ELEMS:
        return _maxpool1d_pad_same_ref(x, k)

    # --- tiling ----------------------------------------------------------------
    itemsize = jnp.dtype(x.dtype).itemsize
    sub = max(8, 32 // itemsize)             # sublane packing: 8 f32, 16 bf16, 32 i8

    # Lane (output-length) tile: as wide as possible for unmasked lane-dense
    # stores and low per-step overhead, while tracking l_out tightly.
    lane_tile = _tight_tile(l_out, _MAX_LANE_TILE, _LANE)

    def _row_cap(lt):                        # rows/block allowed by the VMEM budget
        return (_VMEM_BUDGET // (2 * (k + 1) * lt * itemsize)) // sub * sub

    while lane_tile > _LANE and _row_cap(lane_tile) < sub:   # absurdly large k only
        lane_tile -= _LANE
    row_cap = max(sub, _row_cap(lane_tile))

    # Row (= N*C) tile: grow toward ~4 MB per grid step (more when there are few
    # lane tiles), stay under the VMEM cap, and track `rows` tightly.
    row_from_target = max(
        sub, (_TARGET_STEP_BYTES // ((k + 1) * lane_tile * itemsize)) // sub * sub)
    row_tile_max = max(sub, min(max(_MAX_ROW_TILE, row_from_target), row_cap))
    row_tile = _tight_tile(rows, row_tile_max, sub)

    rows_p = _round_up(rows, row_tile)
    l_out_p = _round_up(l_out, lane_tile)

    # --- build the tap-major (k, rows_p, l_out_p) slab --------------------------
    # Zero left-pad, trim/zero-fill on the right (covers the dropped partial
    # window AND the lane padding), reshape + transpose so the tap index is the
    # leading axis.  Under jit these fuse into a single copy pass feeding the
    # pallas_call.
    xr = x.reshape(rows, l)
    take = min(l, l_out_p * k - pad_left)
    xr = xr[:, :take]
    xp = jnp.pad(
        xr,
        ((0, rows_p - rows), (pad_left, l_out_p * k - pad_left - take)),
        mode="constant",
        constant_values=0,
    )
    xt = xp.reshape(rows_p, l_out_p, k).transpose(2, 0, 1)   # (k, rows_p, l_out_p)

    grid = (rows_p // row_tile, l_out_p // lane_tile)

    cost = pl.CostEstimate(
        flops=rows_p * l_out_p * max(k - 1, 0),
        transcendentals=0,
        bytes_accessed=(k + 1) * rows_p * l_out_p * itemsize,
    )

    out = pl.pallas_call(
        functools.partial(_maxpool_kernel, k=k),
        out_shape=jax.ShapeDtypeStruct((rows_p, l_out_p), x.dtype),
        grid=grid,
        in_specs=[pl.BlockSpec((k, row_tile, lane_tile), lambda i, j: (0, i, j))],
        out_specs=pl.BlockSpec((row_tile, lane_tile), lambda i, j: (i, j)),
        compiler_params=pltpu.CompilerParams(
            # No cross-step carry, each output block written exactly once ->
            # both axes parallel (lets v7x shard even when N*C is one row tile).
            dimension_semantics=("parallel", "parallel"),
        ),
        cost_estimate=cost,
    )(xt)

    return out[:rows, :l_out].reshape(n, c, l_out)


if __name__ == "__main__":
    key = jax.random.PRNGKey(0)
    k1, k2, k3, k4 = jax.random.split(key, 4)

    # Case 1: Pallas path, single block. (N, C, L) = (2, 4, 512), k=2 (the
    # module's actual downsample pool: kernel_size = stride = 2).
    x1 = jax.random.normal(k1, (2, 4, 512), dtype=jnp.float32)
    o1 = jax.block_until_ready(my_maxpool1d_pad_same(x1, 2))
    r1 = _maxpool1d_pad_same_ref(x1, 2)
    assert o1.shape == r1.shape, (o1.shape, r1.shape)
    assert bool(jnp.array_equal(o1, r1)), "mismatch (case 1)"

    # Case 2: multiple lane tiles, k=3 (nonzero left pad), odd length.
    x2 = jax.random.normal(k2, (2, 8, 2053), dtype=jnp.float32)
    o2 = jax.block_until_ready(my_maxpool1d_pad_same(x2, 3))
    r2 = _maxpool1d_pad_same_ref(x2, 3)
    assert o2.shape == r2.shape, (o2.shape, r2.shape)
    assert bool(jnp.array_equal(o2, r2)), "mismatch (case 2)"

    # Case 3: bf16 through the Pallas path (max-pool is exact in any dtype).
    x3 = jax.random.normal(k3, (2, 4, 640), dtype=jnp.bfloat16)
    o3 = jax.block_until_ready(my_maxpool1d_pad_same(x3, 2))
    r3 = _maxpool1d_pad_same_ref(x3, 2)
    assert o3.shape == r3.shape, (o3.shape, r3.shape)
    assert bool(jnp.array_equal(o3, r3)), "mismatch (case 3)"

    # Case 4: tiny deep-layer feature map -> small-shape bypass path.
    x4 = jax.random.normal(k4, (2, 4, 16), dtype=jnp.float32)
    o4 = jax.block_until_ready(my_maxpool1d_pad_same(x4, 3))
    r4 = _maxpool1d_pad_same_ref(x4, 3)
    assert o4.shape == r4.shape, (o4.shape, r4.shape)
    assert bool(jnp.array_equal(o4, r4)), "mismatch (case 4)"

    print("KERNEL_OK")
</pallas_src>

<mosaic_0001>
module attributes {stable_mosaic.version = 11 : i64} {
  func.func @_maxpool_kernel(%arg0: i32, %arg1: i32, %arg2: memref<2x8x256xf32, #tpu.memory_space<vmem>>, %arg3: memref<8x256xf32, #tpu.memory_space<vmem>>) attributes {dimension_semantics = [#tpu.dimension_semantics<parallel>, #tpu.dimension_semantics<parallel>], iteration_bounds = array<i64: 1, 1>, scalar_prefetch = 0 : i64, scratch_operands = 0 : i64, tpu.core_type = #tpu.core_type<tc>, window_params = [{transform_indices = @transform_0, window_bounds = array<i64: 2, 8, 256>}, {transform_indices = @transform_1, window_bounds = array<i64: 8, 256>}]} {
    %c0 = arith.constant 0 : index
    %c0_0 = arith.constant 0 : index
    %c0_1 = arith.constant 0 : index
    %0 = vector.load %arg2[%c0, %c0_0, %c0_1] : memref<2x8x256xf32, #tpu.memory_space<vmem>>, vector<1x8x256xf32>
    %1 = vector.shape_cast %0 : vector<1x8x256xf32> to vector<8x256xf32>
    %c1 = arith.constant 1 : index
    %c0_2 = arith.constant 0 : index
    %c0_3 = arith.constant 0 : index
    %2 = vector.load %arg2[%c1, %c0_2, %c0_3] : memref<2x8x256xf32, #tpu.memory_space<vmem>>, vector<1x8x256xf32>
    %3 = vector.shape_cast %2 : vector<1x8x256xf32> to vector<8x256xf32>
    %4 = arith.maximumf %1, %3 : vector<8x256xf32>
    %c0_4 = arith.constant 0 : index
    %c0_5 = arith.constant 0 : index
    %5 = vector.load %arg3[%c0_4, %c0_5] : memref<8x256xf32, #tpu.memory_space<vmem>>, vector<8x256xf32>
    tpu.vector_store %arg3[%c0_4, %c0_5], %4 {strides = array<i32>} : memref<8x256xf32, #tpu.memory_space<vmem>>, vector<8x256xf32>,
    return
  }
  func.func @transform_0(%arg0: i32, %arg1: i32) -> (i32, i32, i32) {
    %c0_i32 = arith.constant 0 : i32
    %c0_i32_0 = arith.constant 0 : i32
    return %c0_i32, %arg0, %arg1 : i32, i32, i32
  }
  func.func @transform_1(%arg0: i32, %arg1: i32) -> (i32, i32) {
    %c0_i32 = arith.constant 0 : i32
    return %arg0, %arg1 : i32, i32
  }
}

</mosaic_0001>

<llo_original>
// kernel: my_maxpool1d_pad_same.1
$region0: #{my_maxpool1d_pad_same.1}
  #allocation0 [shape = 'u32[]', space=smem, size = 0x4, offset = 0x4, fixed_abs, tag = 'smem constant byte address 0x4 - core index']
  #allocation1 [shape = 'u32[72,128]{1,0:T(1,128)}', space=vmem, size = 0x9000, scoped, tag = 'internal scratch']
  %s0 = inlined_call_operand.vmem [shape: f32[2,8,256], index: 0, kind: input, shape index: {}]
  %s1 = inlined_call_operand.vmem [shape: f32[8,256], index: 1, kind: output, shape index: {}]
  %s2 = sld [smem:[#allocation0]]
  $region14: #{my_maxpool1d_pad_same.1} parent=0
    _
  %s4 = ssub.s32 1, %s2
  %s5 = scalar_select 0, %s4, %s2
  // Predicated region
  $region2: #{my_maxpool1d_pad_same.1} parent=0 // pred_check
    _
  $region3: #{my_maxpool1d_pad_same.1} parent=0 // pred_check_branch
    %7 = sbr.rel (0) target = $region5
  $region4: #{my_maxpool1d_pad_same.1} parent=0 // pred_region
    _
  $region5: #{my_maxpool1d_pad_same.1} parent=0 // pred_fallthru
    _
  %v8 = vld [vmem:[%s0] sm:$0xff]
  %v9 = vld [vmem:[%s0 + $0x8] sm:$0xff]
  %s10 = scalar_lea.vmem %s0, 16
  %v11 = vld [vmem:[%s10] sm:$0xff]
  %v12 = vld [vmem:[%s10 + $0x8] sm:$0xff]
  %v13 = vmax.f32 %v8, %v11
  %v14 = vmax.f32 %v9, %v12
  %15 = vst [vmem:[%s1] sm:$0xff] %v13
  %16 = vst [vmem:[%s1 + $0x8] sm:$0xff] %v14
  // Predicated region
  $region6: #{my_maxpool1d_pad_same.1} parent=0 // pred_check
    _
  $region7: #{my_maxpool1d_pad_same.1} parent=0 // pred_check_branch
    %18 = sbr.rel (0) target = $region9
  $region8: #{my_maxpool1d_pad_same.1} parent=0 // pred_region
    _
  $region9: #{my_maxpool1d_pad_same.1} parent=0 // pred_fallthru
    _
  // Predicated region
  $region10: #{my_maxpool1d_pad_same.1} parent=0 // pred_check
    _
  $region11: #{my_maxpool1d_pad_same.1} parent=0 // pred_check_branch
    %20 = sbr.rel (0) target = $region13
  $region12: #{my_maxpool1d_pad_same.1} parent=0 // pred_region
    _
  $region13: #{my_maxpool1d_pad_same.1} parent=0 // pred_fallthru
    _

</llo_original>
